<compile_context>
chip_gen: v6e
topology: v6e:2x2x1
jax: 0.10.0
libtpu: 0.0.40
codegen_flags: <defaults>
</compile_context>

<pallas_src>
import math

import numpy as np
import jax
import jax.numpy as jnp
from jax.experimental import pallas as pl
from jax.experimental.pallas import tpu as pltpu

# ---------------- module config (SDFNetwork defaults) ----------------
L_LEVELS = 16            # HashGrid n_levels
F_FEAT = 2               # features per level
LOG2_T = 19              # log2_hashmap_size
T_SIZE = 1 << LOG2_T
BASE_RES = 16
PER_LEVEL_SCALE = 1.3819
N_FREQ = 2               # Frequency encoding n_frequencies
XYZ_DIM = L_LEVELS * F_FEAT          # 32
TIME_DIM = N_FREQ * 2                # 4
IN_DIM = XYZ_DIM + TIME_DIM          # 36
IN_PAD = 48                          # feature rows zero-padded to a bf16 sublane multiple
HID = 64

_PRIMES = (1, 2654435761, 805459861)
_SQRT1_2 = 0.7071067811865476


# ---------------- small helpers ----------------
def _round_up(a, m):
    return ((a + m - 1) // m) * m


def _default_compute_dtype():
    """bf16 element-wise math only on chips with a bf16 VPU/EUP (v6e/v7x); f32 otherwise."""
    try:
        kind = jax.devices()[0].device_kind.lower()
    except Exception:
        return jnp.float32
    if ("v6" in kind) or ("v7" in kind) or ("7x" in kind):
        return jnp.bfloat16
    return jnp.float32


def _pick_tile_n(n, tile_max=8192):
    """Big tiles amortize the ~0.35us/grid-step overhead; once there is enough work,
    keep >=4 grid steps so megacore (v7x, 2 TCs) parallel sharding has occupancy."""
    n128 = max(128, _round_up(n, 128))
    if n128 <= min(tile_max, 2048):
        return n128                                     # whole problem in one tile
    for t in (8192, 4096, 2048):
        if t <= tile_max and _round_up(n, t) // t >= 4:
            return t
    return min(2048, tile_max)


# ---------------- in-kernel math ----------------
def _gelu_tanh(x):
    # torch.nn.GELU(approximate='tanh'): ~6 VALU ops/elem; tanh runs on the idle EUP slot.
    return 0.5 * x * (1.0 + jnp.tanh(0.7978845608028654 * (x + 0.044715 * x * x * x)))


def _gelu_erf(x):
    # Exact torch.nn.GELU(): Abramowitz-Stegun 7.1.26 erf (|err| < 1.5e-7), in f32.
    # EUP approx-reciprocal seed + one Newton step => ~f32-accurate division
    # (fixes the approx-reciprocal precision concern from the review).
    xf = x.astype(jnp.float32)
    a1, a2, a3, a4, a5 = 0.254829592, -0.284496736, 1.421413741, -1.453152027, 1.061405429
    p = 0.3275911
    z = xf * _SQRT1_2
    s = jnp.where(z >= 0.0, 1.0, -1.0)
    az = jnp.abs(z)
    d = 1.0 + p * az
    r = pl.reciprocal(d, approx=True)
    r = r * (2.0 - d * r)                       # Newton refinement
    poly = ((((a5 * r + a4) * r + a3) * r + a2) * r + a1) * r
    erf = s * (1.0 - poly * jnp.exp(-az * az))
    return (0.5 * xf * (1.0 + erf)).astype(x.dtype)


def _layernorm_cols(h, g, b, eps=1e-5):
    # torch.nn.LayerNorm(64) over the hidden axis; feature-major layout puts the
    # hidden axis on sublanes (axis 0). Biased variance, eps=1e-5, affine. All f32.
    mu = jnp.mean(h, axis=0, keepdims=True)
    d = h - mu
    var = jnp.mean(d * d, axis=0, keepdims=True)
    return d * jax.lax.rsqrt(var + eps) * g + b


# ---------------- Pallas kernel: MLP backbone (feature-major layout) ----------------
def _make_sdf_mlp_kernel(clip_sdf, compute_dtype, approximate_gelu):
    gelu = _gelu_tanh if approximate_gelu else _gelu_erf

    def kernel(x_ref, w1_ref, w2_ref, slab_ref, o_ref):
        # x_ref:    (IN_PAD, TN)  bf16  feature-major features (hashgrid + time + zero pad)
        # w1_ref:   (HID, IN_PAD) bf16  W1^T (pad columns are zero)
        # w2_ref:   (HID, HID)    bf16  W2^T
        # slab_ref: (HID, 8)      f32   cols = [b1, g1, be1, b2, g2, be2, w3, b3]
        # o_ref:    (1, TN)       f32   lane-dense output row
        x = x_ref[...]
        slab = slab_ref[...]
        b1, g1, be1 = slab[:, 0:1], slab[:, 1:2], slab[:, 2:3]
        b2, g2, be2 = slab[:, 3:4], slab[:, 4:5], slab[:, 5:6]
        w3, b3 = slab[:, 6:7], slab[0:1, 7:8]

        # Linear 1: bf16 MXU matmul, f32 accumulate; LN in f32; GELU in compute dtype.
        h = jnp.dot(w1_ref[...], x, preferred_element_type=jnp.float32) + b1     # (HID, TN)
        h = gelu(_layernorm_cols(h, g1, be1).astype(compute_dtype))
        # Linear 2: GELU output goes straight back to the MXU as bf16 (no f32 round-trip).
        h = jnp.dot(w2_ref[...], h.astype(jnp.bfloat16),
                    preferred_element_type=jnp.float32) + b2
        h = gelu(_layernorm_cols(h, g2, be2).astype(compute_dtype))
        # Linear 3 as a sublane reduction with f32 accumulation; output stays lane-dense.
        prod = h * w3.astype(compute_dtype)
        sdf = jnp.sum(prod.astype(jnp.float32), axis=0, keepdims=True) + b3      # (1, TN)
        if clip_sdf is not None:
            sdf = jnp.clip(sdf, -float(clip_sdf), float(clip_sdf))
        o_ref[...] = sdf

    return kernel


def sdf_backbone_pallas(feat_cm, params, *, clip_sdf=1.0, tile_n=None,
                        approximate_gelu=True, compute_dtype=None):
    """feat_cm: (IN_DIM, N) f32 feature-major features -> sdf (N, 1) f32."""
    c, n = feat_cm.shape
    assert c == IN_DIM
    if compute_dtype is None:
        compute_dtype = _default_compute_dtype()
    if tile_n is None:
        tile_n = _pick_tile_n(n)
    n_pad = _round_up(n, tile_n)

    # Zero-pad feature rows to IN_PAD and point columns to a tile multiple. Features
    # arrive feature-major from the prologue, so there is no pad+transpose relayout.
    xt = jnp.pad(feat_cm.astype(jnp.bfloat16),
                 ((0, IN_PAD - IN_DIM), (0, n_pad - n)))                          # (IN_PAD, n_pad)

    cost = pl.CostEstimate(
        flops=2 * n_pad * (IN_PAD * HID + HID * HID + HID),
        transcendentals=2 * n_pad * HID,   # one tanh per GELU elem, two GELUs
        bytes_accessed=n_pad * (IN_PAD * 2 + 4)
        + (IN_PAD * HID + HID * HID) * 2 + HID * 8 * 4,
    )

    kernel = _make_sdf_mlp_kernel(clip_sdf, compute_dtype, approximate_gelu)
    out = pl.pallas_call(
        kernel,
        out_shape=jax.ShapeDtypeStruct((1, n_pad), jnp.float32),
        grid=(n_pad // tile_n,),
        in_specs=[
            pl.BlockSpec((IN_PAD, tile_n), lambda i: (0, i)),   # features
            pl.BlockSpec((HID, IN_PAD), lambda i: (0, 0)),      # W1^T (grid-invariant)
            pl.BlockSpec((HID, HID), lambda i: (0, 0)),         # W2^T
            pl.BlockSpec((HID, 8), lambda i: (0, 0)),           # packed bias/LN/w3/b3 slab
        ],
        out_specs=pl.BlockSpec((1, tile_n), lambda i: (0, i)),  # lane-dense output row
        compiler_params=pltpu.CompilerParams(
            dimension_semantics=("parallel",),
            vmem_limit_bytes=32 * 1024 * 1024),                 # big tiles fit v5e too
        cost_estimate=cost,
    )(xt, params["w1T"], params["w2T"], params["slab"])
    return out[0, :n].reshape(n, 1)


# ---------------- plain-JAX glue: tcnn-style encodings, emitted feature-major ----------------
def hashgrid_encode_cm(x01, table):
    """x01: (N,3) in [0,1]; table: (L_LEVELS, F_FEAT, T_SIZE) -> (32, N) feature-major f32.
    # TODO(synk): the data-dependent gather over 2^19-entry tables stays in plain JAX.
    """
    n = x01.shape[0]
    feats = []
    for lvl in range(L_LEVELS):
        scale = BASE_RES * (PER_LEVEL_SCALE ** lvl) - 1.0
        res = int(np.ceil(scale)) + 1
        use_hash = (res ** 3) > T_SIZE
        pos = x01 * scale + 0.5
        pos_f = jnp.floor(pos)
        frac = pos - pos_f
        pos_i = pos_f.astype(jnp.uint32)
        acc = jnp.zeros((F_FEAT, n), jnp.float32)
        for corner in range(8):
            off = [(corner >> d) & 1 for d in range(3)]
            cx = pos_i[:, 0] + off[0]
            cy = pos_i[:, 1] + off[1]
            cz = pos_i[:, 2] + off[2]
            if use_hash:
                idx = ((cx * jnp.uint32(_PRIMES[0]))
                       ^ (cy * jnp.uint32(_PRIMES[1]))
                       ^ (cz * jnp.uint32(_PRIMES[2]))) & jnp.uint32(T_SIZE - 1)
            else:
                # tcnn dense-level stride rule: x + y*res + z*res^2
                # TODO(synk): dense-level layout may not bit-match tcnn's alignment rules.
                idx = cx + cy * jnp.uint32(res) + cz * jnp.uint32(res * res)
            w = jnp.ones((n,), jnp.float32)
            for d in range(3):
                fr = frac[:, d]
                w = w * (fr if off[d] else (1.0 - fr))
            # feature-major gather: (F_FEAT, n) directly, no per-level transpose
            acc = acc + w[None, :] * table[lvl][:, idx].astype(jnp.float32)
        feats.append(acc)
    return jnp.concatenate(feats, axis=0)


def time_encode_cm(t):
    """tcnn Frequency(n_frequencies=2): rows [sin(pi t), cos(pi t), sin(2pi t), cos(2pi t)]."""
    tv = t.reshape(-1).astype(jnp.float32)
    pi = math.pi
    return jnp.stack([jnp.sin(pi * tv), jnp.cos(pi * tv),
                      jnp.sin(2.0 * pi * tv), jnp.cos(2.0 * pi * tv)], axis=0)    # (4, N)


def sdf_forward(time, x, params, *, clip_sdf=1.0, tile_n=None,
                approximate_gelu=True, compute_dtype=None):
    """Matches SDFNetwork.forward(time, x): time (N,1), x (N,3) in [-1,1] -> sdf (N,1).
    clip_sdf=None disables the final clamp (PyTorch default clip_sdf=None would crash)."""
    x01 = (x + 1.0) * 0.5
    feat = jnp.concatenate([hashgrid_encode_cm(x01, params["hash_table"]),
                            time_encode_cm(time)], axis=0)                        # (36, N)
    return sdf_backbone_pallas(feat, params, clip_sdf=clip_sdf, tile_n=tile_n,
                               approximate_gelu=approximate_gelu,
                               compute_dtype=compute_dtype)


# ---------------- deterministic parameter init + demo ----------------
if __name__ == "__main__":
    key = jax.random.PRNGKey(0)
    ks = jax.random.split(key, 8)
    N = 256

    x = jax.random.uniform(ks[0], (N, 3), jnp.float32, -1.0, 1.0)
    t = jax.random.uniform(ks[1], (N, 1), jnp.float32, 0.0, 1.0)

    def lin(k, fan_in, fan_out):
        kw, kb = jax.random.split(k)
        bound = 1.0 / math.sqrt(fan_in)
        w = jax.random.uniform(kw, (fan_in, fan_out), jnp.float32, -bound, bound)
        b = jax.random.uniform(kb, (fan_out,), jnp.float32, -bound, bound)
        return w, b

    # feature-major bf16 tables (tcnn itself stores fp16); keeps gather traffic halved
    hash_table_f32 = jax.random.uniform(ks[2], (L_LEVELS, F_FEAT, T_SIZE),
                                        jnp.float32, -1e-4, 1e-4)
    w1, b1 = lin(ks[3], IN_DIM, HID)     # (36, 64), (64,)
    w2, b2 = lin(ks[4], HID, HID)        # (64, 64), (64,)
    w3, b3 = lin(ks[5], HID, 1)          # (64, 1),  (1,)

    w1_pad = jnp.zeros((IN_PAD, HID), jnp.float32).at[:IN_DIM].set(w1)
    slab = jnp.stack(
        [b1,
         jnp.ones((HID,), jnp.float32), jnp.zeros((HID,), jnp.float32),   # LN1 gamma/beta
         b2,
         jnp.ones((HID,), jnp.float32), jnp.zeros((HID,), jnp.float32),   # LN2 gamma/beta
         w3[:, 0],
         jnp.full((HID,), b3[0], jnp.float32)],
        axis=1)                                                            # (64, 8)

    params = dict(
        hash_table=hash_table_f32.astype(jnp.bfloat16),   # (16, 2, 2^19) bf16
        w1T=w1_pad.T.astype(jnp.bfloat16),                # (64, 48) bf16
        w2T=w2.T.astype(jnp.bfloat16),                    # (64, 64) bf16
        slab=slab,                                        # (64, 8)  f32
    )

    out = jax.block_until_ready(jax.jit(sdf_forward)(t, x, params))
    assert out.shape == (N, 1) and out.dtype == jnp.float32
    assert bool(jnp.all(jnp.isfinite(out)))

    # Pure-f32 JAX reference (same tanh-GELU variant); loose tolerance because the
    # Pallas path uses bf16 tables/weights and bf16 VPU math on v6e/v7x.
    def reference(time_, x_):
        feat = jnp.concatenate([hashgrid_encode_cm((x_ + 1.0) * 0.5, hash_table_f32),
                                time_encode_cm(time_)], axis=0).T          # (N, 36)

        def ln(h):
            mu = h.mean(-1, keepdims=True)
            var = ((h - mu) ** 2).mean(-1, keepdims=True)
            return (h - mu) * jax.lax.rsqrt(var + 1e-5)

        h = jax.nn.gelu(ln(feat @ w1 + b1), approximate=True)
        h = jax.nn.gelu(ln(h @ w2 + b2), approximate=True)
        return jnp.clip(h @ w3 + b3, -1.0, 1.0)

    ref = jax.block_until_ready(jax.jit(reference)(t, x))
    max_err = float(jnp.max(jnp.abs(out - ref)))
    assert max_err < 0.2, f"Pallas backbone deviates from f32 reference: {max_err}"
    print("KERNEL_OK")
</pallas_src>

<mosaic_0001>
module attributes {stable_mosaic.version = 11 : i64} {
  func.func @kernel(%arg0: i32, %arg1: memref<48x256xbf16, #tpu.memory_space<vmem>>, %arg2: memref<64x48xbf16, #tpu.memory_space<vmem>>, %arg3: memref<64x64xbf16, #tpu.memory_space<vmem>>, %arg4: memref<64x8xf32, #tpu.memory_space<vmem>>, %arg5: memref<1x256xf32, #tpu.memory_space<vmem>>) attributes {dimension_semantics = [#tpu.dimension_semantics<parallel>], iteration_bounds = array<i64: 1>, scalar_prefetch = 0 : i64, scratch_operands = 0 : i64, tpu.core_type = #tpu.core_type<tc>, window_params = [{transform_indices = @transform_0, window_bounds = array<i64: 48, 256>}, {pipeline_mode = #tpu.pipeline_mode<synchronous>, transform_indices = @transform_1, window_bounds = array<i64: 64, 48>}, {pipeline_mode = #tpu.pipeline_mode<synchronous>, transform_indices = @transform_2, window_bounds = array<i64: 64, 64>}, {pipeline_mode = #tpu.pipeline_mode<synchronous>, transform_indices = @transform_3, window_bounds = array<i64: 64, 8>}, {transform_indices = @transform_4, window_bounds = array<i64: 1, 256>}]} {
    %c0 = arith.constant 0 : index
    %c0_0 = arith.constant 0 : index
    %0 = vector.load %arg1[%c0, %c0_0] : memref<48x256xbf16, #tpu.memory_space<vmem>>, vector<48x256xbf16>
    %c0_1 = arith.constant 0 : index
    %c0_2 = arith.constant 0 : index
    %1 = vector.load %arg4[%c0_1, %c0_2] : memref<64x8xf32, #tpu.memory_space<vmem>>, vector<64x8xf32>
    %2 = vector.extract_strided_slice %1 {offsets = [0, 0], sizes = [64, 1], strides = [1, 1]} : vector<64x8xf32> to vector<64x1xf32>
    %3 = vector.extract_strided_slice %1 {offsets = [0, 1], sizes = [64, 1], strides = [1, 1]} : vector<64x8xf32> to vector<64x1xf32>
    %4 = vector.extract_strided_slice %1 {offsets = [0, 2], sizes = [64, 1], strides = [1, 1]} : vector<64x8xf32> to vector<64x1xf32>
    %5 = vector.extract_strided_slice %1 {offsets = [0, 3], sizes = [64, 1], strides = [1, 1]} : vector<64x8xf32> to vector<64x1xf32>
    %6 = vector.extract_strided_slice %1 {offsets = [0, 4], sizes = [64, 1], strides = [1, 1]} : vector<64x8xf32> to vector<64x1xf32>
    %7 = vector.extract_strided_slice %1 {offsets = [0, 5], sizes = [64, 1], strides = [1, 1]} : vector<64x8xf32> to vector<64x1xf32>
    %8 = vector.extract_strided_slice %1 {offsets = [0, 6], sizes = [64, 1], strides = [1, 1]} : vector<64x8xf32> to vector<64x1xf32>
    %9 = vector.extract_strided_slice %1 {offsets = [0, 7], sizes = [1, 1], strides = [1, 1]} : vector<64x8xf32> to vector<1x1xf32>
    %c0_3 = arith.constant 0 : index
    %c0_4 = arith.constant 0 : index
    %10 = vector.load %arg2[%c0_3, %c0_4] : memref<64x48xbf16, #tpu.memory_space<vmem>>, vector<64x48xbf16>
    %cst = arith.constant dense<0.000000e+00> : vector<64x256xf32>
    %11 = tpu.matmul %10, %0, %cst {dimension_numbers = #tpu.dot_dimension_numbers<[1], [0], [0], [1], [0, 0, 1, 1], [], []>} : vector<64x48xbf16>, vector<48x256xbf16>, vector<64x256xf32> -> vector<64x256xf32>
    %12 = vector.broadcast %2 : vector<64x1xf32> to vector<64x256xf32>
    %13 = arith.addf %11, %12 : vector<64x256xf32>
    %cst_5 = arith.constant dense<0.000000e+00> : vector<256xf32>
    %14 = vector.multi_reduction <add>, %13, %cst_5 [0] : vector<64x256xf32> to vector<256xf32>
    %15 = vector.shape_cast %14 : vector<256xf32> to vector<1x256xf32>
    %cst_6 = arith.constant 6.400000e+01 : f32
    %16 = vector.broadcast %cst_6 : f32 to vector<1x256xf32>
    %17 = arith.divf %15, %16 : vector<1x256xf32>
    %18 = vector.broadcast %17 : vector<1x256xf32> to vector<64x256xf32>
    %19 = arith.subf %13, %18 : vector<64x256xf32>
    %20 = arith.mulf %19, %19 : vector<64x256xf32>
    %cst_7 = arith.constant dense<0.000000e+00> : vector<256xf32>
    %21 = vector.multi_reduction <add>, %20, %cst_7 [0] : vector<64x256xf32> to vector<256xf32>
    %22 = vector.shape_cast %21 : vector<256xf32> to vector<1x256xf32>
    %cst_8 = arith.constant 6.400000e+01 : f32
    %23 = vector.broadcast %cst_8 : f32 to vector<1x256xf32>
    %24 = arith.divf %22, %23 : vector<1x256xf32>
    %cst_9 = arith.constant 9.99999974E-6 : f32
    %25 = vector.broadcast %cst_9 : f32 to vector<1x256xf32>
    %26 = arith.addf %24, %25 : vector<1x256xf32>
    %27 = math.rsqrt %26 : vector<1x256xf32>
    %28 = vector.broadcast %27 : vector<1x256xf32> to vector<64x256xf32>
    %29 = arith.mulf %19, %28 : vector<64x256xf32>
    %30 = vector.broadcast %3 : vector<64x1xf32> to vector<64x256xf32>
    %31 = arith.mulf %29, %30 : vector<64x256xf32>
    %32 = vector.broadcast %4 : vector<64x1xf32> to vector<64x256xf32>
    %33 = arith.addf %31, %32 : vector<64x256xf32>
    %cst_10 = arith.constant 5.000000e-01 : f32
    %34 = vector.broadcast %cst_10 : f32 to vector<64x256xf32>
    %35 = arith.mulf %34, %33 : vector<64x256xf32>
    %cst_11 = arith.constant 4.471500e-02 : f32
    %36 = vector.broadcast %cst_11 : f32 to vector<64x256xf32>
    %37 = arith.mulf %36, %33 : vector<64x256xf32>
    %38 = arith.mulf %37, %33 : vector<64x256xf32>
    %39 = arith.mulf %38, %33 : vector<64x256xf32>
    %40 = arith.addf %33, %39 : vector<64x256xf32>
    %cst_12 = arith.constant 0.797884583 : f32
    %41 = vector.broadcast %cst_12 : f32 to vector<64x256xf32>
    %42 = arith.mulf %41, %40 : vector<64x256xf32>
    %43 = math.tanh %42 : vector<64x256xf32>
    %cst_13 = arith.constant 1.000000e+00 : f32
    %44 = vector.broadcast %cst_13 : f32 to vector<64x256xf32>
    %45 = arith.addf %44, %43 : vector<64x256xf32>
    %46 = arith.mulf %35, %45 : vector<64x256xf32>
    %c0_14 = arith.constant 0 : index
    %c0_15 = arith.constant 0 : index
    %47 = vector.load %arg3[%c0_14, %c0_15] : memref<64x64xbf16, #tpu.memory_space<vmem>>, vector<64x64xbf16>
    %48 = arith.truncf %46 : vector<64x256xf32> to vector<64x256xbf16>
    %cst_16 = arith.constant dense<0.000000e+00> : vector<64x256xf32>
    %49 = tpu.matmul %47, %48, %cst_16 {dimension_numbers = #tpu.dot_dimension_numbers<[1], [0], [0], [1], [0, 0, 1, 1], [], []>} : vector<64x64xbf16>, vector<64x256xbf16>, vector<64x256xf32> -> vector<64x256xf32>
    %50 = vector.broadcast %5 : vector<64x1xf32> to vector<64x256xf32>
    %51 = arith.addf %49, %50 : vector<64x256xf32>
    %cst_17 = arith.constant dense<0.000000e+00> : vector<256xf32>
    %52 = vector.multi_reduction <add>, %51, %cst_17 [0] : vector<64x256xf32> to vector<256xf32>
    %53 = vector.shape_cast %52 : vector<256xf32> to vector<1x256xf32>
    %cst_18 = arith.constant 6.400000e+01 : f32
    %54 = vector.broadcast %cst_18 : f32 to vector<1x256xf32>
    %55 = arith.divf %53, %54 : vector<1x256xf32>
    %56 = vector.broadcast %55 : vector<1x256xf32> to vector<64x256xf32>
    %57 = arith.subf %51, %56 : vector<64x256xf32>
    %58 = arith.mulf %57, %57 : vector<64x256xf32>
    %cst_19 = arith.constant dense<0.000000e+00> : vector<256xf32>
    %59 = vector.multi_reduction <add>, %58, %cst_19 [0] : vector<64x256xf32> to vector<256xf32>
    %60 = vector.shape_cast %59 : vector<256xf32> to vector<1x256xf32>
    %cst_20 = arith.constant 6.400000e+01 : f32
    %61 = vector.broadcast %cst_20 : f32 to vector<1x256xf32>
    %62 = arith.divf %60, %61 : vector<1x256xf32>
    %cst_21 = arith.constant 9.99999974E-6 : f32
    %63 = vector.broadcast %cst_21 : f32 to vector<1x256xf32>
    %64 = arith.addf %62, %63 : vector<1x256xf32>
    %65 = math.rsqrt %64 : vector<1x256xf32>
    %66 = vector.broadcast %65 : vector<1x256xf32> to vector<64x256xf32>
    %67 = arith.mulf %57, %66 : vector<64x256xf32>
    %68 = vector.broadcast %6 : vector<64x1xf32> to vector<64x256xf32>
    %69 = arith.mulf %67, %68 : vector<64x256xf32>
    %70 = vector.broadcast %7 : vector<64x1xf32> to vector<64x256xf32>
    %71 = arith.addf %69, %70 : vector<64x256xf32>
    %cst_22 = arith.constant 5.000000e-01 : f32
    %72 = vector.broadcast %cst_22 : f32 to vector<64x256xf32>
    %73 = arith.mulf %72, %71 : vector<64x256xf32>
    %cst_23 = arith.constant 4.471500e-02 : f32
    %74 = vector.broadcast %cst_23 : f32 to vector<64x256xf32>
    %75 = arith.mulf %74, %71 : vector<64x256xf32>
    %76 = arith.mulf %75, %71 : vector<64x256xf32>
    %77 = arith.mulf %76, %71 : vector<64x256xf32>
    %78 = arith.addf %71, %77 : vector<64x256xf32>
    %cst_24 = arith.constant 0.797884583 : f32
    %79 = vector.broadcast %cst_24 : f32 to vector<64x256xf32>
    %80 = arith.mulf %79, %78 : vector<64x256xf32>
    %81 = math.tanh %80 : vector<64x256xf32>
    %cst_25 = arith.constant 1.000000e+00 : f32
    %82 = vector.broadcast %cst_25 : f32 to vector<64x256xf32>
    %83 = arith.addf %82, %81 : vector<64x256xf32>
    %84 = arith.mulf %73, %83 : vector<64x256xf32>
    %85 = vector.broadcast %8 : vector<64x1xf32> to vector<64x256xf32>
    %86 = arith.mulf %84, %85 : vector<64x256xf32>
    %cst_26 = arith.constant dense<0.000000e+00> : vector<256xf32>
    %87 = vector.multi_reduction <add>, %86, %cst_26 [0] : vector<64x256xf32> to vector<256xf32>
    %88 = vector.shape_cast %87 : vector<256xf32> to vector<1x256xf32>
    %89 = vector.broadcast %9 : vector<1x1xf32> to vector<1x256xf32>
    %90 = arith.addf %88, %89 : vector<1x256xf32>
    %cst_27 = arith.constant -1.000000e+00 : f32
    %cst_28 = arith.constant 1.000000e+00 : f32
    %91 = vector.broadcast %cst_27 : f32 to vector<1x256xf32>
    %92 = arith.maximumf %91, %90 : vector<1x256xf32>
    %93 = vector.broadcast %cst_28 : f32 to vector<1x256xf32>
    %94 = arith.minimumf %93, %92 : vector<1x256xf32>
    %c0_29 = arith.constant 0 : index
    %c0_30 = arith.constant 0 : index
    %95 = vector.load %arg5[%c0_29, %c0_30] : memref<1x256xf32, #tpu.memory_space<vmem>>, vector<1x256xf32>
    tpu.vector_store %arg5[%c0_29, %c0_30], %94 {strides = array<i32>} : memref<1x256xf32, #tpu.memory_space<vmem>>, vector<1x256xf32>,
    return
  }
  func.func @transform_0(%arg0: i32) -> (i32, i32) {
    %c0_i32 = arith.constant 0 : i32
    %c0_i32_0 = arith.constant 0 : i32
    return %c0_i32, %arg0 : i32, i32
  }
  func.func @transform_1(%arg0: i32) -> (i32, i32) {
    %c0_i32 = arith.constant 0 : i32
    %c0_i32_0 = arith.constant 0 : i32
    %c0_i32_1 = arith.constant 0 : i32
    return %c0_i32, %c0_i32_0 : i32, i32
  }
  func.func @transform_2(%arg0: i32) -> (i32, i32) {
    %c0_i32 = arith.constant 0 : i32
    %c0_i32_0 = arith.constant 0 : i32
    %c0_i32_1 = arith.constant 0 : i32
    return %c0_i32, %c0_i32_0 : i32, i32
  }
  func.func @transform_3(%arg0: i32) -> (i32, i32) {
    %c0_i32 = arith.constant 0 : i32
    %c0_i32_0 = arith.constant 0 : i32
    %c0_i32_1 = arith.constant 0 : i32
    return %c0_i32, %c0_i32_0 : i32, i32
  }
  func.func @transform_4(%arg0: i32) -> (i32, i32) {
    %c0_i32 = arith.constant 0 : i32
    %c0_i32_0 = arith.constant 0 : i32
    return %c0_i32, %arg0 : i32, i32
  }
}

</mosaic_0001>

<llo_original>
// kernel: sdf_forward.1
$region0: #{sdf_forward.1}
  #allocation0 [shape = 'u32[]', space=smem, size = 0x4, offset = 0x4, fixed_abs, tag = 'smem constant byte address 0x4 - core index']
  #allocation1 [shape = 'u32[144,128]{1,0:T(1,128)}', space=vmem, size = 0x12000, scoped, tag = 'internal scratch']
  %s0 = inlined_call_operand.vmem [shape: bf16[48,256], index: 0, kind: input, shape index: {}]
  %s1 = inlined_call_operand.vmem [shape: bf16[64,48], index: 1, kind: input, shape index: {}]
  %s2 = inlined_call_operand.vmem [shape: bf16[64,64], index: 2, kind: input, shape index: {}]
  %s3 = inlined_call_operand.vmem [shape: f32[64,8], index: 3, kind: input, shape index: {}]
  %s4 = inlined_call_operand.hbm [shape: f32[1,256], index: 4, kind: output, shape index: {}]
  %s5 = sld [smem:[#allocation0]]
  $region26: #{sdf_forward.1} parent=0
    _
  %s7 = ssub.s32 1, %s5
  %s8 = scalar_select 0, %s7, %s5
  $region1: #{sdf_forward.1} parent=0
    #allocation2 [shape = 'u8[1024]{0}', space=vmem, size = 0x400, scoped, tag = 'output window, operand 0, single buffered']
    #allocation3 [shape = 's32[1]{0}', space=sflag, size = 0x4, scoped, tag = 'scoped memory for sdf_forward.1']
    %9 = vsyncpa [#allocation3], 0
    // Predicated region
    $region2: #{sdf_forward.1} parent=1 // pred_check
      _
    $region3: #{sdf_forward.1} parent=1 // pred_check_branch
      %11 = sbr.rel (0) target = $region5
    $region4: #{sdf_forward.1} parent=1 // pred_region
      _
    $region5: #{sdf_forward.1} parent=1 // pred_fallthru
      _
    // Predicated region
    $region6: #{sdf_forward.1} parent=1 // pred_check
      _
    $region7: #{sdf_forward.1} parent=1 // pred_check_branch
      %13 = sbr.rel (0) target = $region9
    $region8: #{sdf_forward.1} parent=1 // pred_region
      _
    $region9: #{sdf_forward.1} parent=1 // pred_fallthru
      _
    // Predicated region
    $region10: #{sdf_forward.1} parent=1 // pred_check
      _
    $region11: #{sdf_forward.1} parent=1 // pred_check_branch
      %15 = sbr.rel (0) target = $region13
    $region12: #{sdf_forward.1} parent=1 // pred_region
      _
    $region13: #{sdf_forward.1} parent=1 // pred_fallthru
      _
    // Predicated region
    $region14: #{sdf_forward.1} parent=1 // pred_check
      _
    $region15: #{sdf_forward.1} parent=1 // pred_check_branch
      %17 = sbr.rel (0) target = $region17
    $region16: #{sdf_forward.1} parent=1 // pred_region
      _
    $region17: #{sdf_forward.1} parent=1 // pred_fallthru
      _
    %v19 = vld [vmem:[%s0] sm:$0xff]
    %v20 = vld [vmem:[%s0 + $0x8] sm:$0xff]
    %v21 = vld [vmem:[%s0 + $0x10] sm:$0xff]
    %v22 = vld [vmem:[%s0 + $0x18] sm:$0xff]
    %v23 = vld [vmem:[%s0 + $0x20] sm:$0xff]
    %v24 = vld [vmem:[%s0 + $0x28] sm:$0xff]
    %v25 = vld [vmem:[%s3] sm:$0xff]
    %v26 = vld [vmem:[%s3 + $0x8] sm:$0xff]
    %v27 = vld [vmem:[%s3 + $0x10] sm:$0xff]
    %v28 = vld [vmem:[%s3 + $0x18] sm:$0xff]
    %v29 = vld [vmem:[%s3 + $0x20] sm:$0xff]
    %v30 = vld [vmem:[%s3 + $0x28] sm:$0xff]
    %v31 = vld [vmem:[%s3 + $0x30] sm:$0xff]
    %v32 = vld [vmem:[%s3 + $0x38] sm:$0xff]
    %v33 = vld [vmem:[%s1] sm:$0xf]
    %v34 = vld [vmem:[%s1 + $0x4] sm:$0xf]
    %v35 = vld [vmem:[%s1 + $0x8] sm:$0xf]
    %v36 = vld [vmem:[%s1 + $0xc] sm:$0xf]
    %v37 = vld [vmem:[%s1 + $0x10] sm:$0xf]
    %v38 = vld [vmem:[%s1 + $0x14] sm:$0xf]
    %v39 = vld [vmem:[%s1 + $0x18] sm:$0xf]
    %v40 = vld [vmem:[%s1 + $0x1c] sm:$0xf]
    %42 = vset.pattern.permute.xlu0 0
    %43 = vperm.xlu0 %42, %v25
    %v44 = vpop.permute.xlu0 %43
    %47 = vset.pattern.permute.xlu0 0
    %48 = vperm.xlu0 %47, %v26
    %v49 = vpop.permute.xlu0 %48
    %52 = vset.pattern.permute.xlu0 0
    %53 = vperm.xlu0 %52, %v27
    %v54 = vpop.permute.xlu0 %53
    %57 = vset.pattern.permute.xlu0 0
    %58 = vperm.xlu0 %57, %v28
    %v59 = vpop.permute.xlu0 %58
    %62 = vset.pattern.permute.xlu0 0
    %63 = vperm.xlu0 %62, %v29
    %v64 = vpop.permute.xlu0 %63
    %67 = vset.pattern.permute.xlu0 0
    %68 = vperm.xlu0 %67, %v30
    %v69 = vpop.permute.xlu0 %68
    %72 = vset.pattern.permute.xlu0 0
    %73 = vperm.xlu0 %72, %v31
    %v74 = vpop.permute.xlu0 %73
    %77 = vset.pattern.permute.xlu0 0
    %78 = vperm.xlu0 %77, %v32
    %v79 = vpop.permute.xlu0 %78
    %v89 = vunpack.c.l.b16 %v33
    %v90 = vunpack.c.l.b16 %v34
    %v91 = vunpack.c.l.b16 %v35
    %v92 = vunpack.c.l.b16 %v36
    %v93 = vunpack.c.l.b16 %v37
    %v94 = vunpack.c.l.b16 %v38
    %v95 = vunpack.c.l.b16 %v39
    %v96 = vunpack.c.l.b16 %v40
    %v97 = vpack.c.b16 %v90, %v89
    %v98 = vpack.c.b16 %v92, %v91
    %v99 = vpack.c.b16 %v94, %v93
    %v100 = vpack.c.b16 %v96, %v95
    %v107 = vunpack.c.l.b16 %v19
    %v108 = vunpack.c.h.b16 %v19
    %v109 = vunpack.c.l.b16 %v20
    %v110 = vunpack.c.h.b16 %v20
    %v111 = vunpack.c.l.b16 %v21
    %v112 = vunpack.c.h.b16 %v21
    %v113 = vunpack.c.l.b16 %v22
    %v114 = vunpack.c.h.b16 %v22
    %v115 = vunpack.c.l.b16 %v23
    %v116 = vunpack.c.h.b16 %v23
    %v117 = vunpack.c.l.b16 %v24
    %v118 = vunpack.c.h.b16 %v24
    %v119 = vpack.c.b16 %v109, %v107
    %v120 = vpack.c.b16 %v110, %v108
    %v121 = vpack.c.b16 %v113, %v111
    %v122 = vpack.c.b16 %v114, %v112
    %v123 = vpack.c.b16 %v117, %v115
    %v124 = vpack.c.b16 %v118, %v116
    %vm131 = vcmask 392192
    %v133 = vsel %vm131, %v97, 0
    %v136 = vsel %vm131, %v98, 0
    %v139 = vsel %vm131, %v99, 0
    %v142 = vsel %vm131, %v100, 0
    %144 = vmatprep.subr.bf16.mxu0 0
    %145 = vmatpush1.bf16.msra.mxu0 0
    %146 = vmatprep.subr.bf16.mxu0 0
    %147 = vmatpush1.bf16.msra.mxu0 0
    %148 = vmatprep.subr.bf16.mxu0 0
    %149 = vmatpush1.bf16.msra.mxu0 0
    %150 = vmatprep.subr.bf16.mxu0 0
    %151 = vmatpush1.bf16.msra.mxu0 0
    %152 = vmatprep.subr.bf16.mxu0 0
    %153 = vmatpush1.bf16.msra.mxu0 0
    %154 = vmatprep.subr.bf16.mxu0 %v124
    %155 = vmatpush1.bf16.msra.mxu0 %v123
    %156 = vmatprep.subr.bf16.mxu0 %v122
    %157 = vmatpush1.bf16.msra.mxu0 %v121
    %158 = vmatprep.subr.bf16.mxu0 %v120
    %159 = vmatpush1.bf16.msra.mxu0 %v119
    %160 = vmatprep.subr.bf16.mxu0 0
    %161 = vmatpush2.bf16.msra.mxu0 0
    %162 = vmatprep.subr.bf16.mxu0 0
    %163 = vmatpush2.bf16.msra.mxu0 0
    %164 = vmatprep.subr.bf16.mxu0 0
    %165 = vmatpush2.bf16.msra.mxu0 0
    %166 = vmatprep.subr.bf16.mxu0 0
    %167 = vmatpush2.bf16.msra.mxu0 0
    %168 = vmatprep.subr.bf16.mxu0 0
    %169 = vmatpush2.bf16.msra.mxu0 0
    %170 = vmatprep.subr.bf16.mxu0 0
    %171 = vmatpush2.bf16.msra.mxu0 0
    %172 = vmatprep.subr.bf16.mxu0 0
    %173 = vmatpush2.bf16.msra.mxu0 0
    %174 = vmatprep.subr.bf16.mxu0 0
    %175 = vmatpush2.bf16.msra.mxu0 0
    %176 = vmatprep.mubr.bf16.mxu0 0
    %177 = vmatmul.mubr.bf16.gmra.mxu0 %v133
    %v178 = vpop.f32.mrf.mxu0
    %v179 = vadd.f32 %v44, %v178
    %v180 = vpop.f32.mrf.mxu0
    %v181 = vadd.f32 %v44, %v180
    %v182 = vpop.f32.mrf.mxu0
    %v183 = vadd.f32 %v49, %v182
    %v184 = vpop.f32.mrf.mxu0
    %v185 = vadd.f32 %v49, %v184
    %186 = vmatprep.mubr.bf16.mxu0 0
    %187 = vmatmul.mubr.bf16.gmra.mxu0 %v136
    %v188 = vpop.f32.mrf.mxu0
    %v189 = vadd.f32 %v54, %v188
    %v190 = vpop.f32.mrf.mxu0
    %v191 = vadd.f32 %v54, %v190
    %v192 = vpop.f32.mrf.mxu0
    %v193 = vadd.f32 %v59, %v192
    %v194 = vpop.f32.mrf.mxu0
    %v195 = vadd.f32 %v59, %v194
    %196 = vmatprep.mubr.bf16.mxu0 0
    %197 = vmatmul.mubr.bf16.gmra.mxu0 %v139
    %v198 = vpop.f32.mrf.mxu0
    %v199 = vadd.f32 %v64, %v198
    %v200 = vpop.f32.mrf.mxu0
    %v201 = vadd.f32 %v64, %v200
    %v202 = vpop.f32.mrf.mxu0
    %v203 = vadd.f32 %v69, %v202
    %v204 = vpop.f32.mrf.mxu0
    %v205 = vadd.f32 %v69, %v204
    %206 = vmatprep.mubr.bf16.mxu0 0
    %207 = vmatmul.mubr.bf16.gmra.mxu0 %v142
    %v208 = vpop.f32.mrf.mxu0
    %v209 = vadd.f32 %v74, %v208
    %v210 = vpop.f32.mrf.mxu0
    %v211 = vadd.f32 %v74, %v210
    %v212 = vpop.f32.mrf.mxu0
    %v213 = vadd.f32 %v79, %v212
    %v214 = vpop.f32.mrf.mxu0
    %v215 = vadd.f32 %v79, %v214
    %216 = vdwg.mxu0
    %v217 = vadd.f32 %v179, %v183
    %v218 = vadd.f32 %v217, %v189
    %v219 = vadd.f32 %v218, %v193
    %v220 = vadd.f32 %v219, %v199
    %v221 = vadd.f32 %v220, %v203
    %v222 = vadd.f32 %v221, %v209
    %v223 = vadd.f32 %v222, %v213
    %v224 = vrot.slane %v223, 4
    %v225 = vadd.f32 %v223, %v224
    %v226 = vrot.slane %v225, 2
    %v227 = vadd.f32 %v225, %v226
    %v228 = vrot.slane %v227, 1
    %v229 = vadd.f32 %v227, %v228
    %v230 = vadd.f32 %v181, %v185
    %v231 = vadd.f32 %v230, %v191
    %v232 = vadd.f32 %v231, %v195
    %v233 = vadd.f32 %v232, %v201
    %v234 = vadd.f32 %v233, %v205
    %v235 = vadd.f32 %v234, %v211
    %v236 = vadd.f32 %v235, %v215
    %v237 = vrot.slane %v236, 4
    %v238 = vadd.f32 %v236, %v237
    %v239 = vrot.slane %v238, 2
    %v240 = vadd.f32 %v238, %v239
    %v241 = vrot.slane %v240, 1
    %v242 = vadd.f32 %v240, %v241
    %v243 = vrcp.pop 64.0
    %v244 = vmul.f32 %v229, %v243
    %v245 = vmul.f32 %v242, %v243
    %v246 = vsub.f32 %v179, %v244
    %v247 = vsub.f32 %v181, %v245
    %v248 = vsub.f32 %v183, %v244
    %v249 = vsub.f32 %v185, %v245
    %v250 = vsub.f32 %v189, %v244
    %v251 = vsub.f32 %v191, %v245
    %v252 = vsub.f32 %v193, %v244
    %v253 = vsub.f32 %v195, %v245
    %v254 = vsub.f32 %v199, %v244
    %v255 = vsub.f32 %v201, %v245
    %v256 = vsub.f32 %v203, %v244
    %v257 = vsub.f32 %v205, %v245
    %v258 = vsub.f32 %v209, %v244
    %v259 = vsub.f32 %v211, %v245
    %v260 = vsub.f32 %v213, %v244
    %v261 = vsub.f32 %v215, %v245
    %v262 = vmul.f32 %v246, %v246
    %v263 = vmul.f32 %v247, %v247
    %v264 = vmul.f32 %v248, %v248
    %v265 = vmul.f32 %v249, %v249
    %v266 = vmul.f32 %v250, %v250
    %v267 = vmul.f32 %v251, %v251
    %v268 = vmul.f32 %v252, %v252
    %v269 = vmul.f32 %v253, %v253
    %v270 = vmul.f32 %v254, %v254
    %v271 = vmul.f32 %v255, %v255
    %v272 = vmul.f32 %v256, %v256
    %v273 = vmul.f32 %v257, %v257
    %v274 = vmul.f32 %v258, %v258
    %v275 = vmul.f32 %v259, %v259
    %v276 = vmul.f32 %v260, %v260
    %v277 = vmul.f32 %v261, %v261
    %v278 = vadd.f32 %v262, %v264
    %v279 = vadd.f32 %v278, %v266
    %v280 = vadd.f32 %v279, %v268
    %v281 = vadd.f32 %v280, %v270
    %v282 = vadd.f32 %v281, %v272
    %v283 = vadd.f32 %v282, %v274
    %v284 = vadd.f32 %v283, %v276
    %v285 = vrot.slane %v284, 4
    %v286 = vadd.f32 %v284, %v285
    %v287 = vrot.slane %v286, 2
    %v288 = vadd.f32 %v286, %v287
    %v289 = vrot.slane %v288, 1
    %v290 = vadd.f32 %v288, %v289
    %v291 = vadd.f32 %v263, %v265
    %v292 = vadd.f32 %v291, %v267
    %v293 = vadd.f32 %v292, %v269
    %v294 = vadd.f32 %v293, %v271
    %v295 = vadd.f32 %v294, %v273
    %v296 = vadd.f32 %v295, %v275
    %v297 = vadd.f32 %v296, %v277
    %v298 = vrot.slane %v297, 4
    %v299 = vadd.f32 %v297, %v298
    %v300 = vrot.slane %v299, 2
    %v301 = vadd.f32 %v299, %v300
    %v302 = vrot.slane %v301, 1
    %v303 = vadd.f32 %v301, %v302
    %v304 = vmul.f32 %v290, %v243
    %v305 = vmul.f32 %v303, %v243
    %v306 = vadd.f32 %v304, 1e-05
    %v307 = vadd.f32 %v305, 1e-05
    %v308 = vrsqrt.pop %v306
    %v309 = vrsqrt.pop %v307
    %v310 = vmul.f32 %v246, %v308
    %v311 = vmul.f32 %v247, %v309
    %v312 = vmul.f32 %v248, %v308
    %v313 = vmul.f32 %v249, %v309
    %v314 = vmul.f32 %v250, %v308
    %v315 = vmul.f32 %v251, %v309
    %v316 = vmul.f32 %v252, %v308
    %v317 = vmul.f32 %v253, %v309
    %v318 = vmul.f32 %v254, %v308
    %v319 = vmul.f32 %v255, %v309
    %v320 = vmul.f32 %v256, %v308
    %v321 = vmul.f32 %v257, %v309
    %v322 = vmul.f32 %v258, %v308
    %v323 = vmul.f32 %v259, %v309
    %v324 = vmul.f32 %v260, %v308
    %v325 = vmul.f32 %v261, %v309
    %326 = vset.pattern.permute.xlu0 1
    %327 = vperm.xlu0 %326, %v25
    %v328 = vpop.permute.xlu0 %327
    %330 = vset.pattern.permute.xlu0 1
    %331 = vperm.xlu0 %330, %v26
    %v332 = vpop.permute.xlu0 %331
    %334 = vset.pattern.permute.xlu0 1
    %335 = vperm.xlu0 %334, %v27
    %v336 = vpop.permute.xlu0 %335
    %338 = vset.pattern.permute.xlu0 1
    %339 = vperm.xlu0 %338, %v28
    %v340 = vpop.permute.xlu0 %339
    %342 = vset.pattern.permute.xlu0 1
    %343 = vperm.xlu0 %342, %v29
    %v344 = vpop.permute.xlu0 %343
    %346 = vset.pattern.permute.xlu0 1
    %347 = vperm.xlu0 %346, %v30
    %v348 = vpop.permute.xlu0 %347
    %350 = vset.pattern.permute.xlu0 1
    %351 = vperm.xlu0 %350, %v31
    %v352 = vpop.permute.xlu0 %351
    %354 = vset.pattern.permute.xlu0 1
    %355 = vperm.xlu0 %354, %v32
    %v356 = vpop.permute.xlu0 %355
    %v358 = vmul.f32 %v310, %v328
    %v359 = vmul.f32 %v311, %v328
    %v360 = vmul.f32 %v312, %v332
    %v361 = vmul.f32 %v313, %v332
    %v362 = vmul.f32 %v314, %v336
    %v363 = vmul.f32 %v315, %v336
    %v364 = vmul.f32 %v316, %v340
    %v365 = vmul.f32 %v317, %v340
    %v366 = vmul.f32 %v318, %v344
    %v367 = vmul.f32 %v319, %v344
    %v368 = vmul.f32 %v320, %v348
    %v369 = vmul.f32 %v321, %v348
    %v370 = vmul.f32 %v322, %v352
    %v371 = vmul.f32 %v323, %v352
    %v372 = vmul.f32 %v324, %v356
    %v373 = vmul.f32 %v325, %v356
    %374 = vset.pattern.permute.xlu0 2
    %375 = vperm.xlu0 %374, %v25
    %v376 = vpop.permute.xlu0 %375
    %378 = vset.pattern.permute.xlu0 2
    %379 = vperm.xlu0 %378, %v26
    %v380 = vpop.permute.xlu0 %379
    %382 = vset.pattern.permute.xlu0 2
    %383 = vperm.xlu0 %382, %v27
    %v384 = vpop.permute.xlu0 %383
    %386 = vset.pattern.permute.xlu0 2
    %387 = vperm.xlu0 %386, %v28
    %v388 = vpop.permute.xlu0 %387
    %390 = vset.pattern.permute.xlu0 2
    %391 = vperm.xlu0 %390, %v29
    %v392 = vpop.permute.xlu0 %391
    %394 = vset.pattern.permute.xlu0 2
    %395 = vperm.xlu0 %394, %v30
    %v396 = vpop.permute.xlu0 %395
    %398 = vset.pattern.permute.xlu0 2
    %399 = vperm.xlu0 %398, %v31
    %v400 = vpop.permute.xlu0 %399
    %402 = vset.pattern.permute.xlu0 2
    %403 = vperm.xlu0 %402, %v32
    %v404 = vpop.permute.xlu0 %403
    %v406 = vadd.f32 %v358, %v376
    %v407 = vadd.f32 %v359, %v376
    %v408 = vadd.f32 %v360, %v380
    %v409 = vadd.f32 %v361, %v380
    %v410 = vadd.f32 %v362, %v384
    %v411 = vadd.f32 %v363, %v384
    %v412 = vadd.f32 %v364, %v388
    %v413 = vadd.f32 %v365, %v388
    %v414 = vadd.f32 %v366, %v392
    %v415 = vadd.f32 %v367, %v392
    %v416 = vadd.f32 %v368, %v396
    %v417 = vadd.f32 %v369, %v396
    %v418 = vadd.f32 %v370, %v400
    %v419 = vadd.f32 %v371, %v400
    %v420 = vadd.f32 %v372, %v404
    %v421 = vadd.f32 %v373, %v404
    %v422 = vmul.f32 %v406, 0.5
    %v423 = vmul.f32 %v407, 0.5
    %v424 = vmul.f32 %v408, 0.5
    %v425 = vmul.f32 %v409, 0.5
    %v426 = vmul.f32 %v410, 0.5
    %v427 = vmul.f32 %v411, 0.5
    %v428 = vmul.f32 %v412, 0.5
    %v429 = vmul.f32 %v413, 0.5
    %v430 = vmul.f32 %v414, 0.5
    %v431 = vmul.f32 %v415, 0.5
    %v432 = vmul.f32 %v416, 0.5
    %v433 = vmul.f32 %v417, 0.5
    %v434 = vmul.f32 %v418, 0.5
    %v435 = vmul.f32 %v419, 0.5
    %v436 = vmul.f32 %v420, 0.5
    %v437 = vmul.f32 %v421, 0.5
    %v438 = vmul.f32 %v406, 0.044715
    %v439 = vmul.f32 %v407, 0.044715
    %v440 = vmul.f32 %v408, 0.044715
    %v441 = vmul.f32 %v409, 0.044715
    %v442 = vmul.f32 %v410, 0.044715
    %v443 = vmul.f32 %v411, 0.044715
    %v444 = vmul.f32 %v412, 0.044715
    %v445 = vmul.f32 %v413, 0.044715
    %v446 = vmul.f32 %v414, 0.044715
    %v447 = vmul.f32 %v415, 0.044715
    %v448 = vmul.f32 %v416, 0.044715
    %v449 = vmul.f32 %v417, 0.044715
    %v450 = vmul.f32 %v418, 0.044715
    %v451 = vmul.f32 %v419, 0.044715
    %v452 = vmul.f32 %v420, 0.044715
    %v453 = vmul.f32 %v421, 0.044715
    %v454 = vmul.f32 %v438, %v406
    %v455 = vmul.f32 %v439, %v407
    %v456 = vmul.f32 %v440, %v408
    %v457 = vmul.f32 %v441, %v409
    %v458 = vmul.f32 %v442, %v410
    %v459 = vmul.f32 %v443, %v411
    %v460 = vmul.f32 %v444, %v412
    %v461 = vmul.f32 %v445, %v413
    %v462 = vmul.f32 %v446, %v414
    %v463 = vmul.f32 %v447, %v415
    %v464 = vmul.f32 %v448, %v416
    %v465 = vmul.f32 %v449, %v417
    %v466 = vmul.f32 %v450, %v418
    %v467 = vmul.f32 %v451, %v419
    %v468 = vmul.f32 %v452, %v420
    %v469 = vmul.f32 %v453, %v421
    %v470 = vmul.f32 %v454, %v406
    %v471 = vmul.f32 %v455, %v407
    %v472 = vmul.f32 %v456, %v408
    %v473 = vmul.f32 %v457, %v409
    %v474 = vmul.f32 %v458, %v410
    %v475 = vmul.f32 %v459, %v411
    %v476 = vmul.f32 %v460, %v412
    %v477 = vmul.f32 %v461, %v413
    %v478 = vmul.f32 %v462, %v414
    %v479 = vmul.f32 %v463, %v415
    %v480 = vmul.f32 %v464, %v416
    %v481 = vmul.f32 %v465, %v417
    %v482 = vmul.f32 %v466, %v418
    %v483 = vmul.f32 %v467, %v419
    %v484 = vmul.f32 %v468, %v420
    %v485 = vmul.f32 %v469, %v421
    %v486 = vadd.f32 %v406, %v470
    %v487 = vadd.f32 %v407, %v471
    %v488 = vadd.f32 %v408, %v472
    %v489 = vadd.f32 %v409, %v473
    %v490 = vadd.f32 %v410, %v474
    %v491 = vadd.f32 %v411, %v475
    %v492 = vadd.f32 %v412, %v476
    %v493 = vadd.f32 %v413, %v477
    %v494 = vadd.f32 %v414, %v478
    %v495 = vadd.f32 %v415, %v479
    %v496 = vadd.f32 %v416, %v480
    %v497 = vadd.f32 %v417, %v481
    %v498 = vadd.f32 %v418, %v482
    %v499 = vadd.f32 %v419, %v483
    %v500 = vadd.f32 %v420, %v484
    %v501 = vadd.f32 %v421, %v485
    %v502 = vmul.f32 %v486, 0.7978846
    %v503 = vmul.f32 %v487, 0.7978846
    %v504 = vmul.f32 %v488, 0.7978846
    %v505 = vmul.f32 %v489, 0.7978846
    %v506 = vmul.f32 %v490, 0.7978846
    %v507 = vmul.f32 %v491, 0.7978846
    %v508 = vmul.f32 %v492, 0.7978846
    %v509 = vmul.f32 %v493, 0.7978846
    %v510 = vmul.f32 %v494, 0.7978846
    %v511 = vmul.f32 %v495, 0.7978846
    %v512 = vmul.f32 %v496, 0.7978846
    %v513 = vmul.f32 %v497, 0.7978846
    %v514 = vmul.f32 %v498, 0.7978846
    %v515 = vmul.f32 %v499, 0.7978846
    %v516 = vmul.f32 %v500, 0.7978846
    %v517 = vmul.f32 %v501, 0.7978846
    %v518 = vtanh.pop %v502
    %v519 = vtanh.pop %v503
    %v520 = vtanh.pop %v504
    %v521 = vtanh.pop %v505
    %v522 = vtanh.pop %v506
    %v523 = vtanh.pop %v507
    %v524 = vtanh.pop %v508
    %v525 = vtanh.pop %v509
    %v526 = vtanh.pop %v510
    %v527 = vtanh.pop %v511
    %v528 = vtanh.pop %v512
    %v529 = vtanh.pop %v513
    %v530 = vtanh.pop %v514
    %v531 = vtanh.pop %v515
    %v532 = vtanh.pop %v516
    %v533 = vtanh.pop %v517
    %v534 = vadd.f32 %v518, 1.0
    %v535 = vadd.f32 %v519, 1.0
    %v536 = vadd.f32 %v520, 1.0
    %v537 = vadd.f32 %v521, 1.0
    %v538 = vadd.f32 %v522, 1.0
    %v539 = vadd.f32 %v523, 1.0
    %v540 = vadd.f32 %v524, 1.0
    %v541 = vadd.f32 %v525, 1.0
    %v542 = vadd.f32 %v526, 1.0
    %v543 = vadd.f32 %v527, 1.0
    %v544 = vadd.f32 %v528, 1.0
    %v545 = vadd.f32 %v529, 1.0
    %v546 = vadd.f32 %v530, 1.0
    %v547 = vadd.f32 %v531, 1.0
    %v548 = vadd.f32 %v532, 1.0
    %v549 = vadd.f32 %v533, 1.0
    %v550 = vmul.f32 %v422, %v534
    %v551 = vmul.f32 %v423, %v535
    %v552 = vmul.f32 %v424, %v536
    %v553 = vmul.f32 %v425, %v537
    %v554 = vmul.f32 %v426, %v538
    %v555 = vmul.f32 %v427, %v539
    %v556 = vmul.f32 %v428, %v540
    %v557 = vmul.f32 %v429, %v541
    %v558 = vmul.f32 %v430, %v542
    %v559 = vmul.f32 %v431, %v543
    %v560 = vmul.f32 %v432, %v544
    %v561 = vmul.f32 %v433, %v545
    %v562 = vmul.f32 %v434, %v546
    %v563 = vmul.f32 %v435, %v547
    %v564 = vmul.f32 %v436, %v548
    %v565 = vmul.f32 %v437, %v549
    %v566 = vld [vmem:[%s2] sm:$0xf]
    %v567 = vld [vmem:[%s2 + $0x4] sm:$0xf]
    %v568 = vld [vmem:[%s2 + $0x8] sm:$0xf]
    %v569 = vld [vmem:[%s2 + $0xc] sm:$0xf]
    %v570 = vld [vmem:[%s2 + $0x10] sm:$0xf]
    %v571 = vld [vmem:[%s2 + $0x14] sm:$0xf]
    %v572 = vld [vmem:[%s2 + $0x18] sm:$0xf]
    %v573 = vld [vmem:[%s2 + $0x1c] sm:$0xf]
    %v574 = vpack.c.bf16 %v552, %v550
    %v575 = vpack.c.bf16 %v553, %v551
    %v576 = vpack.c.bf16 %v556, %v554
    %v577 = vpack.c.bf16 %v557, %v555
    %v578 = vpack.c.bf16 %v560, %v558
    %v579 = vpack.c.bf16 %v561, %v559
    %v580 = vpack.c.bf16 %v564, %v562
    %v581 = vpack.c.bf16 %v565, %v563
    %582 = vset.pattern.permute.xlu0 3
    %583 = vperm.xlu0 %582, %v25
    %v584 = vpop.permute.xlu0 %583
    %586 = vset.pattern.permute.xlu0 3
    %587 = vperm.xlu0 %586, %v26
    %v588 = vpop.permute.xlu0 %587
    %590 = vset.pattern.permute.xlu0 3
    %591 = vperm.xlu0 %590, %v27
    %v592 = vpop.permute.xlu0 %591
    %594 = vset.pattern.permute.xlu0 3
    %595 = vperm.xlu0 %594, %v28
    %v596 = vpop.permute.xlu0 %595
    %598 = vset.pattern.permute.xlu0 3
    %599 = vperm.xlu0 %598, %v29
    %v600 = vpop.permute.xlu0 %599
    %602 = vset.pattern.permute.xlu0 3
    %603 = vperm.xlu0 %602, %v30
    %v604 = vpop.permute.xlu0 %603
    %606 = vset.pattern.permute.xlu0 3
    %607 = vperm.xlu0 %606, %v31
    %v608 = vpop.permute.xlu0 %607
    %610 = vset.pattern.permute.xlu0 3
    %611 = vperm.xlu0 %610, %v32
    %v612 = vpop.permute.xlu0 %611
    %v622 = vunpack.c.l.b16 %v566
    %v623 = vunpack.c.l.b16 %v567
    %v624 = vunpack.c.l.b16 %v568
    %v625 = vunpack.c.l.b16 %v569
    %v626 = vunpack.c.l.b16 %v570
    %v627 = vunpack.c.l.b16 %v571
    %v628 = vunpack.c.l.b16 %v572
    %v629 = vunpack.c.l.b16 %v573
    %v630 = vpack.c.b16 %v623, %v622
    %v631 = vpack.c.b16 %v625, %v624
    %v632 = vpack.c.b16 %v627, %v626
    %v633 = vpack.c.b16 %v629, %v628
    %vm634 = vcmask 523264
    %v636 = vsel %vm634, %v630, 0
    %v639 = vsel %vm634, %v631, 0
    %v642 = vsel %vm634, %v632, 0
    %v645 = vsel %vm634, %v633, 0
    %647 = vmatprep.subr.bf16.mxu0 0
    %648 = vmatpush1.bf16.msra.mxu0 0
    %649 = vmatprep.subr.bf16.mxu0 0
    %650 = vmatpush1.bf16.msra.mxu0 0
    %651 = vmatprep.subr.bf16.mxu0 0
    %652 = vmatpush1.bf16.msra.mxu0 0
    %653 = vmatprep.subr.bf16.mxu0 0
    %654 = vmatpush1.bf16.msra.mxu0 0
    %655 = vmatprep.subr.bf16.mxu0 %v581
    %656 = vmatpush1.bf16.msra.mxu0 %v580
    %657 = vmatprep.subr.bf16.mxu0 %v579
    %658 = vmatpush1.bf16.msra.mxu0 %v578
    %659 = vmatprep.subr.bf16.mxu0 %v577
    %660 = vmatpush1.bf16.msra.mxu0 %v576
    %661 = vmatprep.subr.bf16.mxu0 %v575
    %662 = vmatpush1.bf16.msra.mxu0 %v574
    %663 = vmatprep.subr.bf16.mxu0 0
    %664 = vmatpush2.bf16.msra.mxu0 0
    %665 = vmatprep.subr.bf16.mxu0 0
    %666 = vmatpush2.bf16.msra.mxu0 0
    %667 = vmatprep.subr.bf16.mxu0 0
    %668 = vmatpush2.bf16.msra.mxu0 0
    %669 = vmatprep.subr.bf16.mxu0 0
    %670 = vmatpush2.bf16.msra.mxu0 0
    %671 = vmatprep.subr.bf16.mxu0 0
    %672 = vmatpush2.bf16.msra.mxu0 0
    %673 = vmatprep.subr.bf16.mxu0 0
    %674 = vmatpush2.bf16.msra.mxu0 0
    %675 = vmatprep.subr.bf16.mxu0 0
    %676 = vmatpush2.bf16.msra.mxu0 0
    %677 = vmatprep.subr.bf16.mxu0 0
    %678 = vmatpush2.bf16.msra.mxu0 0
    %679 = vmatprep.mubr.bf16.mxu0 0
    %680 = vmatmul.mubr.bf16.gmra.mxu0 %v636
    %v681 = vpop.f32.mrf.mxu0
    %v682 = vadd.f32 %v584, %v681
    %v683 = vpop.f32.mrf.mxu0
    %v684 = vadd.f32 %v584, %v683
    %v685 = vpop.f32.mrf.mxu0
    %v686 = vadd.f32 %v588, %v685
    %v687 = vpop.f32.mrf.mxu0
    %v688 = vadd.f32 %v588, %v687
    %689 = vmatprep.mubr.bf16.mxu0 0
    %690 = vmatmul.mubr.bf16.gmra.mxu0 %v639
    %v691 = vpop.f32.mrf.mxu0
    %v692 = vadd.f32 %v592, %v691
    %v693 = vpop.f32.mrf.mxu0
    %v694 = vadd.f32 %v592, %v693
    %v695 = vpop.f32.mrf.mxu0
    %v696 = vadd.f32 %v596, %v695
    %v697 = vpop.f32.mrf.mxu0
    %v698 = vadd.f32 %v596, %v697
    %699 = vmatprep.mubr.bf16.mxu0 0
    %700 = vmatmul.mubr.bf16.gmra.mxu0 %v642
    %v701 = vpop.f32.mrf.mxu0
    %v702 = vadd.f32 %v600, %v701
    %v703 = vpop.f32.mrf.mxu0
    %v704 = vadd.f32 %v600, %v703
    %v705 = vpop.f32.mrf.mxu0
    %v706 = vadd.f32 %v604, %v705
    %v707 = vpop.f32.mrf.mxu0
    %v708 = vadd.f32 %v604, %v707
    %709 = vmatprep.mubr.bf16.mxu0 0
    %710 = vmatmul.mubr.bf16.gmra.mxu0 %v645
    %v711 = vpop.f32.mrf.mxu0
    %v712 = vadd.f32 %v608, %v711
    %v713 = vpop.f32.mrf.mxu0
    %v714 = vadd.f32 %v608, %v713
    %v715 = vpop.f32.mrf.mxu0
    %v716 = vadd.f32 %v612, %v715
    %v717 = vpop.f32.mrf.mxu0
    %v718 = vadd.f32 %v612, %v717
    %719 = vdwg.mxu0
    %v720 = vadd.f32 %v682, %v686
    %v721 = vadd.f32 %v720, %v692
    %v722 = vadd.f32 %v721, %v696
    %v723 = vadd.f32 %v722, %v702
    %v724 = vadd.f32 %v723, %v706
    %v725 = vadd.f32 %v724, %v712
    %v726 = vadd.f32 %v725, %v716
    %v727 = vrot.slane %v726, 4
    %v728 = vadd.f32 %v726, %v727
    %v729 = vrot.slane %v728, 2
    %v730 = vadd.f32 %v728, %v729
    %v731 = vrot.slane %v730, 1
    %v732 = vadd.f32 %v730, %v731
    %v733 = vadd.f32 %v684, %v688
    %v734 = vadd.f32 %v733, %v694
    %v735 = vadd.f32 %v734, %v698
    %v736 = vadd.f32 %v735, %v704
    %v737 = vadd.f32 %v736, %v708
    %v738 = vadd.f32 %v737, %v714
    %v739 = vadd.f32 %v738, %v718
    %v740 = vrot.slane %v739, 4
    %v741 = vadd.f32 %v739, %v740
    %v742 = vrot.slane %v741, 2
    %v743 = vadd.f32 %v741, %v742
    %v744 = vrot.slane %v743, 1
    %v745 = vadd.f32 %v743, %v744
    %v746 = vmul.f32 %v732, %v243
    %v747 = vmul.f32 %v745, %v243
    %v748 = vsub.f32 %v682, %v746
    %v749 = vsub.f32 %v684, %v747
    %v750 = vsub.f32 %v686, %v746
    %v751 = vsub.f32 %v688, %v747
    %v752 = vsub.f32 %v692, %v746
    %v753 = vsub.f32 %v694, %v747
    %v754 = vsub.f32 %v696, %v746
    %v755 = vsub.f32 %v698, %v747
    %v756 = vsub.f32 %v702, %v746
    %v757 = vsub.f32 %v704, %v747
    %v758 = vsub.f32 %v706, %v746
    %v759 = vsub.f32 %v708, %v747
    %v760 = vsub.f32 %v712, %v746
    %v761 = vsub.f32 %v714, %v747
    %v762 = vsub.f32 %v716, %v746
    %v763 = vsub.f32 %v718, %v747
    %v764 = vmul.f32 %v748, %v748
    %v765 = vmul.f32 %v749, %v749
    %v766 = vmul.f32 %v750, %v750
    %v767 = vmul.f32 %v751, %v751
    %v768 = vmul.f32 %v752, %v752
    %v769 = vmul.f32 %v753, %v753
    %v770 = vmul.f32 %v754, %v754
    %v771 = vmul.f32 %v755, %v755
    %v772 = vmul.f32 %v756, %v756
    %v773 = vmul.f32 %v757, %v757
    %v774 = vmul.f32 %v758, %v758
    %v775 = vmul.f32 %v759, %v759
    %v776 = vmul.f32 %v760, %v760
    %v777 = vmul.f32 %v761, %v761
    %v778 = vmul.f32 %v762, %v762
    %v779 = vmul.f32 %v763, %v763
    %v780 = vadd.f32 %v764, %v766
    %v781 = vadd.f32 %v780, %v768
    %v782 = vadd.f32 %v781, %v770
    %v783 = vadd.f32 %v782, %v772
    %v784 = vadd.f32 %v783, %v774
    %v785 = vadd.f32 %v784, %v776
    %v786 = vadd.f32 %v785, %v778
    %v787 = vrot.slane %v786, 4
    %v788 = vadd.f32 %v786, %v787
    %v789 = vrot.slane %v788, 2
    %v790 = vadd.f32 %v788, %v789
    %v791 = vrot.slane %v790, 1
    %v792 = vadd.f32 %v790, %v791
    %v793 = vadd.f32 %v765, %v767
    %v794 = vadd.f32 %v793, %v769
    %v795 = vadd.f32 %v794, %v771
    %v796 = vadd.f32 %v795, %v773
    %v797 = vadd.f32 %v796, %v775
    %v798 = vadd.f32 %v797, %v777
    %v799 = vadd.f32 %v798, %v779
    %v800 = vrot.slane %v799, 4
    %v801 = vadd.f32 %v799, %v800
    %v802 = vrot.slane %v801, 2
    %v803 = vadd.f32 %v801, %v802
    %v804 = vrot.slane %v803, 1
    %v805 = vadd.f32 %v803, %v804
    %v806 = vmul.f32 %v792, %v243
    %v807 = vmul.f32 %v805, %v243
    %v808 = vadd.f32 %v806, 1e-05
    %v809 = vadd.f32 %v807, 1e-05
    %v810 = vrsqrt.pop %v808
    %v811 = vrsqrt.pop %v809
    %v812 = vmul.f32 %v748, %v810
    %v813 = vmul.f32 %v749, %v811
    %v814 = vmul.f32 %v750, %v810
    %v815 = vmul.f32 %v751, %v811
    %v816 = vmul.f32 %v752, %v810
    %v817 = vmul.f32 %v753, %v811
    %v818 = vmul.f32 %v754, %v810
    %v819 = vmul.f32 %v755, %v811
    %v820 = vmul.f32 %v756, %v810
    %v821 = vmul.f32 %v757, %v811
    %v822 = vmul.f32 %v758, %v810
    %v823 = vmul.f32 %v759, %v811
    %v824 = vmul.f32 %v760, %v810
    %v825 = vmul.f32 %v761, %v811
    %v826 = vmul.f32 %v762, %v810
    %v827 = vmul.f32 %v763, %v811
    %828 = vset.pattern.permute.xlu0 4
    %829 = vperm.xlu0 %828, %v25
    %v830 = vpop.permute.xlu0 %829
    %832 = vset.pattern.permute.xlu0 4
    %833 = vperm.xlu0 %832, %v26
    %v834 = vpop.permute.xlu0 %833
    %836 = vset.pattern.permute.xlu0 4
    %837 = vperm.xlu0 %836, %v27
    %v838 = vpop.permute.xlu0 %837
    %840 = vset.pattern.permute.xlu0 4
    %841 = vperm.xlu0 %840, %v28
    %v842 = vpop.permute.xlu0 %841
    %844 = vset.pattern.permute.xlu0 4
    %845 = vperm.xlu0 %844, %v29
    %v846 = vpop.permute.xlu0 %845
    %848 = vset.pattern.permute.xlu0 4
    %849 = vperm.xlu0 %848, %v30
    %v850 = vpop.permute.xlu0 %849
    %852 = vset.pattern.permute.xlu0 4
    %853 = vperm.xlu0 %852, %v31
    %v854 = vpop.permute.xlu0 %853
    %856 = vset.pattern.permute.xlu0 4
    %857 = vperm.xlu0 %856, %v32
    %v858 = vpop.permute.xlu0 %857
    %v860 = vmul.f32 %v812, %v830
    %v861 = vmul.f32 %v813, %v830
    %v862 = vmul.f32 %v814, %v834
    %v863 = vmul.f32 %v815, %v834
    %v864 = vmul.f32 %v816, %v838
    %v865 = vmul.f32 %v817, %v838
    %v866 = vmul.f32 %v818, %v842
    %v867 = vmul.f32 %v819, %v842
    %v868 = vmul.f32 %v820, %v846
    %v869 = vmul.f32 %v821, %v846
    %v870 = vmul.f32 %v822, %v850
    %v871 = vmul.f32 %v823, %v850
    %v872 = vmul.f32 %v824, %v854
    %v873 = vmul.f32 %v825, %v854
    %v874 = vmul.f32 %v826, %v858
    %v875 = vmul.f32 %v827, %v858
    %876 = vset.pattern.permute.xlu0 5
    %877 = vperm.xlu0 %876, %v25
    %v878 = vpop.permute.xlu0 %877
    %880 = vset.pattern.permute.xlu0 5
    %881 = vperm.xlu0 %880, %v26
    %v882 = vpop.permute.xlu0 %881
    %884 = vset.pattern.permute.xlu0 5
    %885 = vperm.xlu0 %884, %v27
    %v886 = vpop.permute.xlu0 %885
    %888 = vset.pattern.permute.xlu0 5
    %889 = vperm.xlu0 %888, %v28
    %v890 = vpop.permute.xlu0 %889
    %892 = vset.pattern.permute.xlu0 5
    %893 = vperm.xlu0 %892, %v29
    %v894 = vpop.permute.xlu0 %893
    %896 = vset.pattern.permute.xlu0 5
    %897 = vperm.xlu0 %896, %v30
    %v898 = vpop.permute.xlu0 %897
    %900 = vset.pattern.permute.xlu0 5
    %901 = vperm.xlu0 %900, %v31
    %v902 = vpop.permute.xlu0 %901
    %904 = vset.pattern.permute.xlu0 5
    %905 = vperm.xlu0 %904, %v32
    %v906 = vpop.permute.xlu0 %905
    %v908 = vadd.f32 %v860, %v878
    %v909 = vadd.f32 %v861, %v878
    %v910 = vadd.f32 %v862, %v882
    %v911 = vadd.f32 %v863, %v882
    %v912 = vadd.f32 %v864, %v886
    %v913 = vadd.f32 %v865, %v886
    %v914 = vadd.f32 %v866, %v890
    %v915 = vadd.f32 %v867, %v890
    %v916 = vadd.f32 %v868, %v894
    %v917 = vadd.f32 %v869, %v894
    %v918 = vadd.f32 %v870, %v898
    %v919 = vadd.f32 %v871, %v898
    %v920 = vadd.f32 %v872, %v902
    %v921 = vadd.f32 %v873, %v902
    %v922 = vadd.f32 %v874, %v906
    %v923 = vadd.f32 %v875, %v906
    %v924 = vmul.f32 %v908, 0.5
    %v925 = vmul.f32 %v909, 0.5
    %v926 = vmul.f32 %v910, 0.5
    %v927 = vmul.f32 %v911, 0.5
    %v928 = vmul.f32 %v912, 0.5
    %v929 = vmul.f32 %v913, 0.5
    %v930 = vmul.f32 %v914, 0.5
    %v931 = vmul.f32 %v915, 0.5
    %v932 = vmul.f32 %v916, 0.5
    %v933 = vmul.f32 %v917, 0.5
    %v934 = vmul.f32 %v918, 0.5
    %v935 = vmul.f32 %v919, 0.5
    %v936 = vmul.f32 %v920, 0.5
    %v937 = vmul.f32 %v921, 0.5
    %v938 = vmul.f32 %v922, 0.5
    %v939 = vmul.f32 %v923, 0.5
    %v940 = vmul.f32 %v908, 0.044715
    %v941 = vmul.f32 %v909, 0.044715
    %v942 = vmul.f32 %v910, 0.044715
    %v943 = vmul.f32 %v911, 0.044715
    %v944 = vmul.f32 %v912, 0.044715
    %v945 = vmul.f32 %v913, 0.044715
    %v946 = vmul.f32 %v914, 0.044715
    %v947 = vmul.f32 %v915, 0.044715
    %v948 = vmul.f32 %v916, 0.044715
    %v949 = vmul.f32 %v917, 0.044715
    %v950 = vmul.f32 %v918, 0.044715
    %v951 = vmul.f32 %v919, 0.044715
    %v952 = vmul.f32 %v920, 0.044715
    %v953 = vmul.f32 %v921, 0.044715
    %v954 = vmul.f32 %v922, 0.044715
    %v955 = vmul.f32 %v923, 0.044715
    %v956 = vmul.f32 %v940, %v908
    %v957 = vmul.f32 %v941, %v909
    %v958 = vmul.f32 %v942, %v910
    %v959 = vmul.f32 %v943, %v911
    %v960 = vmul.f32 %v944, %v912
    %v961 = vmul.f32 %v945, %v913
    %v962 = vmul.f32 %v946, %v914
    %v963 = vmul.f32 %v947, %v915
    %v964 = vmul.f32 %v948, %v916
    %v965 = vmul.f32 %v949, %v917
    %v966 = vmul.f32 %v950, %v918
    %v967 = vmul.f32 %v951, %v919
    %v968 = vmul.f32 %v952, %v920
    %v969 = vmul.f32 %v953, %v921
    %v970 = vmul.f32 %v954, %v922
    %v971 = vmul.f32 %v955, %v923
    %v972 = vmul.f32 %v956, %v908
    %v973 = vmul.f32 %v957, %v909
    %v974 = vmul.f32 %v958, %v910
    %v975 = vmul.f32 %v959, %v911
    %v976 = vmul.f32 %v960, %v912
    %v977 = vmul.f32 %v961, %v913
    %v978 = vmul.f32 %v962, %v914
    %v979 = vmul.f32 %v963, %v915
    %v980 = vmul.f32 %v964, %v916
    %v981 = vmul.f32 %v965, %v917
    %v982 = vmul.f32 %v966, %v918
    %v983 = vmul.f32 %v967, %v919
    %v984 = vmul.f32 %v968, %v920
    %v985 = vmul.f32 %v969, %v921
    %v986 = vmul.f32 %v970, %v922
    %v987 = vmul.f32 %v971, %v923
    %v988 = vadd.f32 %v908, %v972
    %v989 = vadd.f32 %v909, %v973
    %v990 = vadd.f32 %v910, %v974
    %v991 = vadd.f32 %v911, %v975
    %v992 = vadd.f32 %v912, %v976
    %v993 = vadd.f32 %v913, %v977
    %v994 = vadd.f32 %v914, %v978
    %v995 = vadd.f32 %v915, %v979
    %v996 = vadd.f32 %v916, %v980
    %v997 = vadd.f32 %v917, %v981
    %v998 = vadd.f32 %v918, %v982
    %v999 = vadd.f32 %v919, %v983
    %v1000 = vadd.f32 %v920, %v984
    %v1001 = vadd.f32 %v921, %v985
    %v1002 = vadd.f32 %v922, %v986
    %v1003 = vadd.f32 %v923, %v987
    %v1004 = vmul.f32 %v988, 0.7978846
    %v1005 = vmul.f32 %v989, 0.7978846
    %v1006 = vmul.f32 %v990, 0.7978846
    %v1007 = vmul.f32 %v991, 0.7978846
    %v1008 = vmul.f32 %v992, 0.7978846
    %v1009 = vmul.f32 %v993, 0.7978846
    %v1010 = vmul.f32 %v994, 0.7978846
    %v1011 = vmul.f32 %v995, 0.7978846
    %v1012 = vmul.f32 %v996, 0.7978846
    %v1013 = vmul.f32 %v997, 0.7978846
    %v1014 = vmul.f32 %v998, 0.7978846
    %v1015 = vmul.f32 %v999, 0.7978846
    %v1016 = vmul.f32 %v1000, 0.7978846
    %v1017 = vmul.f32 %v1001, 0.7978846
    %v1018 = vmul.f32 %v1002, 0.7978846
    %v1019 = vmul.f32 %v1003, 0.7978846
    %v1020 = vtanh.pop %v1004
    %v1021 = vtanh.pop %v1005
    %v1022 = vtanh.pop %v1006
    %v1023 = vtanh.pop %v1007
    %v1024 = vtanh.pop %v1008
    %v1025 = vtanh.pop %v1009
    %v1026 = vtanh.pop %v1010
    %v1027 = vtanh.pop %v1011
    %v1028 = vtanh.pop %v1012
    %v1029 = vtanh.pop %v1013
    %v1030 = vtanh.pop %v1014
    %v1031 = vtanh.pop %v1015
    %v1032 = vtanh.pop %v1016
    %v1033 = vtanh.pop %v1017
    %v1034 = vtanh.pop %v1018
    %v1035 = vtanh.pop %v1019
    %v1036 = vadd.f32 %v1020, 1.0
    %v1037 = vadd.f32 %v1021, 1.0
    %v1038 = vadd.f32 %v1022, 1.0
    %v1039 = vadd.f32 %v1023, 1.0
    %v1040 = vadd.f32 %v1024, 1.0
    %v1041 = vadd.f32 %v1025, 1.0
    %v1042 = vadd.f32 %v1026, 1.0
    %v1043 = vadd.f32 %v1027, 1.0
    %v1044 = vadd.f32 %v1028, 1.0
    %v1045 = vadd.f32 %v1029, 1.0
    %v1046 = vadd.f32 %v1030, 1.0
    %v1047 = vadd.f32 %v1031, 1.0
    %v1048 = vadd.f32 %v1032, 1.0
    %v1049 = vadd.f32 %v1033, 1.0
    %v1050 = vadd.f32 %v1034, 1.0
    %v1051 = vadd.f32 %v1035, 1.0
    %v1052 = vmul.f32 %v924, %v1036
    %v1053 = vmul.f32 %v925, %v1037
    %v1054 = vmul.f32 %v926, %v1038
    %v1055 = vmul.f32 %v927, %v1039
    %v1056 = vmul.f32 %v928, %v1040
    %v1057 = vmul.f32 %v929, %v1041
    %v1058 = vmul.f32 %v930, %v1042
    %v1059 = vmul.f32 %v931, %v1043
    %v1060 = vmul.f32 %v932, %v1044
    %v1061 = vmul.f32 %v933, %v1045
    %v1062 = vmul.f32 %v934, %v1046
    %v1063 = vmul.f32 %v935, %v1047
    %v1064 = vmul.f32 %v936, %v1048
    %v1065 = vmul.f32 %v937, %v1049
    %v1066 = vmul.f32 %v938, %v1050
    %v1067 = vmul.f32 %v939, %v1051
    %1068 = vset.pattern.permute.xlu0 6
    %1069 = vperm.xlu0 %1068, %v25
    %v1070 = vpop.permute.xlu0 %1069
    %1072 = vset.pattern.permute.xlu0 6
    %1073 = vperm.xlu0 %1072, %v26
    %v1074 = vpop.permute.xlu0 %1073
    %1076 = vset.pattern.permute.xlu0 6
    %1077 = vperm.xlu0 %1076, %v27
    %v1078 = vpop.permute.xlu0 %1077
    %1080 = vset.pattern.permute.xlu0 6
    %1081 = vperm.xlu0 %1080, %v28
    %v1082 = vpop.permute.xlu0 %1081
    %1084 = vset.pattern.permute.xlu0 6
    %1085 = vperm.xlu0 %1084, %v29
    %v1086 = vpop.permute.xlu0 %1085
    %1088 = vset.pattern.permute.xlu0 6
    %1089 = vperm.xlu0 %1088, %v30
    %v1090 = vpop.permute.xlu0 %1089
    %1092 = vset.pattern.permute.xlu0 6
    %1093 = vperm.xlu0 %1092, %v31
    %v1094 = vpop.permute.xlu0 %1093
    %1096 = vset.pattern.permute.xlu0 6
    %1097 = vperm.xlu0 %1096, %v32
    %v1098 = vpop.permute.xlu0 %1097
    %v1100 = vmul.f32 %v1052, %v1070
    %v1101 = vmul.f32 %v1053, %v1070
    %v1102 = vmul.f32 %v1054, %v1074
    %v1103 = vmul.f32 %v1055, %v1074
    %v1104 = vmul.f32 %v1056, %v1078
    %v1105 = vmul.f32 %v1057, %v1078
    %v1106 = vmul.f32 %v1058, %v1082
    %v1107 = vmul.f32 %v1059, %v1082
    %v1108 = vmul.f32 %v1060, %v1086
    %v1109 = vmul.f32 %v1061, %v1086
    %v1110 = vmul.f32 %v1062, %v1090
    %v1111 = vmul.f32 %v1063, %v1090
    %v1112 = vmul.f32 %v1064, %v1094
    %v1113 = vmul.f32 %v1065, %v1094
    %v1114 = vmul.f32 %v1066, %v1098
    %v1115 = vmul.f32 %v1067, %v1098
    %v1116 = vadd.f32 %v1100, %v1102
    %v1117 = vadd.f32 %v1116, %v1104
    %v1118 = vadd.f32 %v1117, %v1106
    %v1119 = vadd.f32 %v1118, %v1108
    %v1120 = vadd.f32 %v1119, %v1110
    %v1121 = vadd.f32 %v1120, %v1112
    %v1122 = vadd.f32 %v1121, %v1114
    %v1123 = vrot.slane %v1122, 4
    %v1124 = vadd.f32 %v1122, %v1123
    %v1125 = vrot.slane %v1124, 2
    %v1126 = vadd.f32 %v1124, %v1125
    %v1127 = vrot.slane %v1126, 1
    %v1128 = vadd.f32 %v1126, %v1127
    %v1129 = vadd.f32 %v1101, %v1103
    %v1130 = vadd.f32 %v1129, %v1105
    %v1131 = vadd.f32 %v1130, %v1107
    %v1132 = vadd.f32 %v1131, %v1109
    %v1133 = vadd.f32 %v1132, %v1111
    %v1134 = vadd.f32 %v1133, %v1113
    %v1135 = vadd.f32 %v1134, %v1115
    %v1136 = vrot.slane %v1135, 4
    %v1137 = vadd.f32 %v1135, %v1136
    %v1138 = vrot.slane %v1137, 2
    %v1139 = vadd.f32 %v1137, %v1138
    %v1140 = vrot.slane %v1139, 1
    %v1141 = vadd.f32 %v1139, %v1140
    %1142 = vset.pattern.permute.xlu0 7
    %1143 = vperm.xlu0 %1142, %v25
    %v1144 = vpop.permute.xlu0 %1143
    %v1146 = vadd.f32 %v1128, %v1144
    %v1147 = vadd.f32 %v1141, %v1144
    %v1148 = vmax.f32 %v1146, -1.0
    %v1149 = vmax.f32 %v1147, -1.0
    %v1150 = vmin.f32 %v1148, 1.0
    %v1151 = vmin.f32 %v1149, 1.0
    %v1154 = vcombine.low %v1150, %v1151
    %v1156 = vunpack.c.l.s4 1966171168
    %v1157 = vunpack.c.0.s8 %v1156
    %v1158 = vlaneseq
    %v1159 = vshrl.u32 %v1158, 7
    %v1160 = vsub.s32 %v1157, %v1159
    %v1161 = vrot.slane %v1154, %v1160
    %v1163 = vunpack.c.l.s4 1966171168
    %v1164 = vunpack.c.0.s8 %v1163
    %v1165 = vlaneseq
    %v1166 = vshrl.u32 %v1165, 7
    %v1167 = vsub.s32 %v1164, %v1166
    %v1168 = vrot.slane %v1161, %v1167
    %v1170 = vlaneseq
    %vm1171 = vcmp.ge.s32.totalorder %v1170, 0
    %vm1172 = vcmp.lt.s32.totalorder %v1170, 256
    %vm1173 = vmand %vm1171, %vm1172
    %1174 = vst.msk [vmem:[#allocation2] sm:$0x3] %vm1173, %v1168
    // Predicated region
    $region18: #{sdf_forward.1} parent=1 // pred_check
      _
    $region19: #{sdf_forward.1} parent=1 // pred_check_branch
      %1176 = sbr.rel (0) target = $region21
    $region20: #{sdf_forward.1} parent=1 // pred_region
      %s1178 = ssub.s32 32, 32
      %1179 = vsyncadd [#allocation3], %s1178
      %s1181 = sshll.u32 [#allocation2], 4
      %s1182 = int_to_ptr.vmem [resolvable:$true] %s1181
      %1184 = dma.vmem_to_hbm [thread:$0]  %s1182, 32, %s4, [#allocation3]
    $region21: #{sdf_forward.1} parent=1 // pred_fallthru
      _
    // Predicated region
    $region22: #{sdf_forward.1} parent=1 // pred_check
      _
    $region23: #{sdf_forward.1} parent=1 // pred_check_branch
      %1186 = sbr.rel (0) target = $region25
    $region24: #{sdf_forward.1} parent=1 // pred_region
      %1187 = dma.done [#allocation3], 32
    $region25: #{sdf_forward.1} parent=1 // pred_fallthru
      _
    %1188 = vsyncpa [#allocation3], 1

</llo_original>
